<compile_context>
chip_gen: v7x
topology: tpu7x:2x2x1
jax: 0.10.0
libtpu: 0.0.40
codegen_flags: <defaults>
</compile_context>

<pallas_src>
import jax
import jax.numpy as jnp
from jax.experimental import pallas as pl
from jax.experimental.pallas import tpu as pltpu


def _gcn_kernel_batched(adj_ref, nodes_ref, w_ref, out_ref):
    # adj_ref:   (W, block_n, N)
    # nodes_ref: (W, N, Fin)
    # w_ref:     (W, Fin, Fout)
    # out_ref:   (W, block_n, Fout)
    agg = jnp.einsum('wij,wjf->wif', adj_ref[...], nodes_ref[...],
                     preferred_element_type=jnp.float32)
    out_ref[...] = jnp.einsum('wif,wfo->wio', agg, w_ref[...],
                              preferred_element_type=jnp.float32
                              ).astype(out_ref.dtype)


def _gcn_kernel_per_window(adj_ref, nodes_ref, w_ref, out_ref):
    # adj_ref: (block_n, N), nodes_ref: (N, Fin), w_ref: (Fin, Fout)
    agg = jnp.dot(adj_ref[...], nodes_ref[...],
                  preferred_element_type=jnp.float32)
    out_ref[...] = jnp.dot(agg, w_ref[...],
                           preferred_element_type=jnp.float32
                           ).astype(out_ref.dtype)


def _pick_block_n(N):
    """Largest convenient sublane-aligned row tile (full slice for small N)."""
    if N <= 512:
        return N
    for cand in (512, 256, 128, 64, 32, 16, 8):
        if N % cand == 0:
            return cand
    return N  # no aligned divisor -> take the full (untiled) slice


def graph_convolution_forward(adjacency, nodes, weights, *,
                              vmem_budget_bytes=20 * 1024 * 1024):
    """GraphConvolution.forward on TPU via Pallas.

    Args:
      adjacency: (B, W, N, N) float array.
      nodes:     (B, W, N, Fin) float array.
      weights:   (Wp, Fin, Fout) float array (module parameter, Wp >= W).
      vmem_budget_bytes: soft cap on double-buffered VMEM for the batched path.
    Returns:
      (B, W, N, Fout) float32 array.
    """
    adjacency = adjacency.astype(jnp.float32)
    nodes = nodes.astype(jnp.float32)
    weights = weights.astype(jnp.float32)

    B, W, N, _ = adjacency.shape
    Fin = nodes.shape[-1]
    Wp, _, Fout = weights.shape

    # PyTorch: weights[:, -window_size:, :, :]  -> keep the last W weight slices.
    w_used = weights[Wp - W:, :, :]

    block_n = _pick_block_n(N)
    nb = N // block_n

    # Double-buffered f32 VMEM footprint if all W windows share one grid step.
    batched_bytes = 8 * (W * block_n * N + W * N * Fin
                         + W * Fin * Fout + W * block_n * Fout)

    if batched_bytes <= vmem_budget_bytes:
        # Batched path: grid step = (batch, row-block) over all W windows.
        grid = (B, nb)
        return pl.pallas_call(
            _gcn_kernel_batched,
            grid=grid,
            in_specs=[
                # adjacency row-block for all windows: (W, block_n, N)
                pl.BlockSpec((None, W, block_n, N), lambda b, n: (b, 0, n, 0)),
                # full node-feature slab for this batch: (W, N, Fin)
                pl.BlockSpec((None, W, N, Fin), lambda b, n: (b, 0, 0, 0)),
                # full weight tensor, constant index_map -> stays resident
                pl.BlockSpec((W, Fin, Fout), lambda b, n: (0, 0, 0)),
            ],
            out_specs=pl.BlockSpec((None, W, block_n, Fout),
                                   lambda b, n: (b, 0, n, 0)),
            out_shape=jax.ShapeDtypeStruct((B, W, N, Fout), jnp.float32),
            compiler_params=pltpu.CompilerParams(
                dimension_semantics=("parallel", "parallel")),
        )(adjacency, nodes, w_used)

    # Fallback for large slices: one (batch, window, row-block) per grid step.
    grid = (B, W, nb)
    return pl.pallas_call(
        _gcn_kernel_per_window,
        grid=grid,
        in_specs=[
            pl.BlockSpec((None, None, block_n, N), lambda b, w, n: (b, w, n, 0)),
            pl.BlockSpec((None, None, N, Fin), lambda b, w, n: (b, w, 0, 0)),
            pl.BlockSpec((None, Fin, Fout), lambda b, w, n: (w, 0, 0)),
        ],
        out_specs=pl.BlockSpec((None, None, block_n, Fout),
                               lambda b, w, n: (b, w, n, 0)),
        out_shape=jax.ShapeDtypeStruct((B, W, N, Fout), jnp.float32),
        compiler_params=pltpu.CompilerParams(
            dimension_semantics=("parallel", "parallel", "parallel"),
            vmem_limit_bytes=64 * 1024 * 1024),
    )(adjacency, nodes, w_used)


if __name__ == "__main__":
    # Small shapes consistent with the module's forward signature.
    batch_size = 2
    window_size = 3
    node_num = 16
    in_features = 8
    out_features = 32

    key = jax.random.PRNGKey(0)
    k_adj, k_nodes, k_w = jax.random.split(key, 3)

    adjacency = jax.random.uniform(
        k_adj, (batch_size, window_size, node_num, node_num), dtype=jnp.float32)
    nodes = jax.random.normal(
        k_nodes, (batch_size, window_size, node_num, in_features), dtype=jnp.float32)
    # Xavier-uniform-style init for the (window_size, in, out) parameter tensor.
    limit = (6.0 / (in_features + out_features)) ** 0.5
    weights = jax.random.uniform(
        k_w, (window_size, in_features, out_features),
        dtype=jnp.float32, minval=-limit, maxval=limit)

    output = graph_convolution_forward(adjacency, nodes, weights)
    jax.block_until_ready(output)

    # Pure-JAX reference (same op order as the PyTorch module).
    agg_ref = jnp.einsum('bwij,bwjf->bwif', adjacency, nodes)
    ref = jnp.einsum('bwif,wfo->bwio', agg_ref, weights)

    assert output.shape == (batch_size, window_size, node_num, out_features)
    assert bool(jnp.allclose(output, ref, rtol=1e-5, atol=1e-5))

    print("KERNEL_OK")
</pallas_src>

<mosaic_0001>
module attributes {stable_mosaic.version = 11 : i64} {
  func.func @_gcn_kernel_batched(%arg0: i32, %arg1: i32, %arg2: memref<1x3x16x16xf32, #tpu.memory_space<vmem>>, %arg3: memref<1x3x16x8xf32, #tpu.memory_space<vmem>>, %arg4: memref<3x8x32xf32, #tpu.memory_space<vmem>>, %arg5: memref<1x3x16x32xf32, #tpu.memory_space<vmem>>) attributes {dimension_semantics = [#tpu.dimension_semantics<parallel>, #tpu.dimension_semantics<parallel>], iteration_bounds = array<i64: 2, 1>, scalar_prefetch = 0 : i64, scratch_operands = 0 : i64, tpu.core_type = #tpu.core_type<tc>, window_params = [{transform_indices = @transform_0, window_bounds = array<i64: 1, 3, 16, 16>}, {transform_indices = @transform_1, window_bounds = array<i64: 1, 3, 16, 8>}, {pipeline_mode = #tpu.pipeline_mode<synchronous>, transform_indices = @transform_2, window_bounds = array<i64: 3, 8, 32>}, {transform_indices = @transform_3, window_bounds = array<i64: 1, 3, 16, 32>}]} {
    %c0 = arith.constant 0 : index
    %c0_0 = arith.constant 0 : index
    %c0_1 = arith.constant 0 : index
    %c0_2 = arith.constant 0 : index
    %0 = vector.load %arg2[%c0, %c0_0, %c0_1, %c0_2] : memref<1x3x16x16xf32, #tpu.memory_space<vmem>>, vector<1x3x16x16xf32>
    %1 = vector.shape_cast %0 : vector<1x3x16x16xf32> to vector<3x16x16xf32>
    %c0_3 = arith.constant 0 : index
    %c0_4 = arith.constant 0 : index
    %c0_5 = arith.constant 0 : index
    %c0_6 = arith.constant 0 : index
    %2 = vector.load %arg3[%c0_3, %c0_4, %c0_5, %c0_6] : memref<1x3x16x8xf32, #tpu.memory_space<vmem>>, vector<1x3x16x8xf32>
    %3 = vector.shape_cast %2 : vector<1x3x16x8xf32> to vector<3x16x8xf32>
    "tpu.trace_start"() <{level = 10 : i32, message = "wij,wjf->wif"}> : () -> ()
    %cst = arith.constant dense<0.000000e+00> : vector<3x16x8xf32>
    %4 = tpu.matmul %1, %3, %cst {dimension_numbers = #tpu.dot_dimension_numbers<[2], [1], [1], [2], [0, 0, 0, 1, 1, 2], [0], [0]>} : vector<3x16x16xf32>, vector<3x16x8xf32>, vector<3x16x8xf32> -> vector<3x16x8xf32>
    "tpu.trace_stop"() : () -> ()
    %c0_7 = arith.constant 0 : index
    %c0_8 = arith.constant 0 : index
    %c0_9 = arith.constant 0 : index
    %5 = vector.load %arg4[%c0_7, %c0_8, %c0_9] : memref<3x8x32xf32, #tpu.memory_space<vmem>>, vector<3x8x32xf32>
    "tpu.trace_start"() <{level = 10 : i32, message = "wif,wfo->wio"}> : () -> ()
    %cst_10 = arith.constant dense<0.000000e+00> : vector<3x16x32xf32>
    %6 = tpu.matmul %4, %5, %cst_10 {dimension_numbers = #tpu.dot_dimension_numbers<[2], [1], [1], [2], [0, 0, 0, 1, 1, 2], [0], [0]>} : vector<3x16x8xf32>, vector<3x8x32xf32>, vector<3x16x32xf32> -> vector<3x16x32xf32>
    "tpu.trace_stop"() : () -> ()
    %c0_11 = arith.constant 0 : index
    %c0_12 = arith.constant 0 : index
    %c0_13 = arith.constant 0 : index
    %c0_14 = arith.constant 0 : index
    %7 = vector.load %arg5[%c0_11, %c0_12, %c0_13, %c0_14] : memref<1x3x16x32xf32, #tpu.memory_space<vmem>>, vector<1x3x16x32xf32>
    %8 = vector.shape_cast %7 : vector<1x3x16x32xf32> to vector<3x16x32xf32>
    %9 = vector.shape_cast %6 : vector<3x16x32xf32> to vector<1x3x16x32xf32>
    tpu.vector_store %arg5[%c0_11, %c0_12, %c0_13, %c0_14], %9 {strides = array<i32>} : memref<1x3x16x32xf32, #tpu.memory_space<vmem>>, vector<1x3x16x32xf32>,
    return
  }
  func.func @transform_0(%arg0: i32, %arg1: i32) -> (i32, i32, i32, i32) {
    %c0_i32 = arith.constant 0 : i32
    %c0_i32_0 = arith.constant 0 : i32
    %c0_i32_1 = arith.constant 0 : i32
    return %arg0, %c0_i32, %arg1, %c0_i32_0 : i32, i32, i32, i32
  }
  func.func @transform_1(%arg0: i32, %arg1: i32) -> (i32, i32, i32, i32) {
    %c0_i32 = arith.constant 0 : i32
    %c0_i32_0 = arith.constant 0 : i32
    %c0_i32_1 = arith.constant 0 : i32
    %c0_i32_2 = arith.constant 0 : i32
    return %arg0, %c0_i32, %c0_i32_0, %c0_i32_1 : i32, i32, i32, i32
  }
  func.func @transform_2(%arg0: i32, %arg1: i32) -> (i32, i32, i32) {
    %c0_i32 = arith.constant 0 : i32
    %c0_i32_0 = arith.constant 0 : i32
    %c0_i32_1 = arith.constant 0 : i32
    %c0_i32_2 = arith.constant 0 : i32
    return %c0_i32, %c0_i32_0, %c0_i32_1 : i32, i32, i32
  }
  func.func @transform_3(%arg0: i32, %arg1: i32) -> (i32, i32, i32, i32) {
    %c0_i32 = arith.constant 0 : i32
    %c0_i32_0 = arith.constant 0 : i32
    %c0_i32_1 = arith.constant 0 : i32
    return %arg0, %c0_i32, %arg1, %c0_i32_0 : i32, i32, i32, i32
  }
}

</mosaic_0001>

<llo_original>
// kernel: tpu_custom_call.1
$region0: #{tpu_custom_call.1}
  #allocation0 [shape = 'u32[]', space=smem, size = 0x4, offset = 0x4, fixed_abs, tag = 'smem constant byte address 0x4 - core index']
  #allocation1 [shape = 'u32[144,128]{1,0:T(1,128)}', space=vmem, size = 0x12000, scoped, tag = 'internal scratch']
  %s0 = inlined_call_operand.vmem [shape: f32[2,3,16,16], index: 0, kind: input, shape index: {}]
  %s1 = inlined_call_operand.vmem [shape: f32[2,3,16,8], index: 1, kind: input, shape index: {}]
  %s2 = inlined_call_operand.vmem [shape: f32[3,8,32], index: 2, kind: input, shape index: {}]
  %s3 = inlined_call_operand.hbm [shape: f32[2,3,16,32], index: 3, kind: output, shape index: {}]
  %s4 = sld [smem:[#allocation0]]
  $region45: #{tpu_custom_call.1} parent=0
    _
  %s6 = ssub.s32 1, %s4
  %s7 = scalar_select 0, %s6, %s4
  $region1: #{tpu_custom_call.1} parent=0
    #allocation2 [shape = 'u8[49152]{0}', space=vmem, size = 0xc000, scoped, tag = 'output window, operand 0']
    #allocation3 [shape = 's32[2]{0}', space=sflag, size = 0x8, scoped, tag = 'scoped memory for tpu_custom_call.1']
    %8 = vsyncpa [#allocation3], 0
    %s9 = scalar_lea.sflag [#allocation3], 1
    %10 = vsyncpa %s9, 0
    loop: start=0, step=1, limit=4
    $region2: #{tpu_custom_call.1} parent=1 // loop_pre_header
      _
    $region3: #{tpu_custom_call.1} parent=1 // loop_header
      %s12 = sphi 0, %s16
      %p13 = scmp.ge.s32.totalorder %s12, 4
      %s19 = sphi 0, %s31
      %s20 = sphi 0, %s27
      %s21 = sphi 0, %s19
      %s22 = sphi 0, %s20
      %s23 = sphi 0, %s21
      %s24 = sphi 0, %s22
      %s36 = sphi 0, %s38
      %s39 = sphi 0, %s36
      %s40 = sphi 0, %s39
      %s56 = sphi 0, %s40
      %s62 = sphi 0, %s64
      %s65 = sphi 0, %s62
      %s66 = sphi 0, %s65
      %s82 = sphi 0, %s66
      %s86 = sphi 0, %s86
      %s88 = sphi 0, %s86
      %s89 = sphi 0, %s88
      %s103 = sphi 0, %s89
      %s111 = sphi 0, %s113
      %s114 = sphi 0, %s111
      %s115 = sphi 0, %s114
      %s131 = sphi 0, %s115
    $region4: #{tpu_custom_call.1} parent=1 // loop_header_branch
      %15 = sbr.rel (%p13) target = $region8
    $region5: #{tpu_custom_call.1} parent=1 // loop_body
      %s17 = ssub.s32 %s12, 1
      %s18 = ssub.s32 %s12, 2
      %s25 = sadd.s32 1, %s20
      %p26 = scmp.ge.s32.totalorder %s25, 1
      %s27 = scalar_select %p26, 0, %s25
      %s28 = sadd.s32 1, %s19
      %s29 = scalar_select %p26, %s28, %s19
      %p30 = scmp.ge.s32.totalorder %s29, 2
      %s31 = scalar_select %p30, 0, %s29
      %s32 = ssub.s32 %s19, %s31
      %s33 = ssub.s32 %s20, %s27
      %s34 = sor.u32 %s32, %s33
      %p35 = scmp.eq.s32.totalorder %s34, 0
      %s37 = sadd.s32 %s36, 1
      %s38 = scalar_select %p35, %s36, %s37
      %p41 = pneg %p35
      %p42 = scmp.eq.s32.totalorder %s12, 1
      %p43 = por %p41, %p42
      %p44 = scmp.ne.s32.totalorder %s36, %s39
      %p45 = scmp.eq.s32.totalorder %s12, 0
      %p46 = por %p44, %p45
      %p47 = scmp.ne.s32.totalorder %s36, %s39
      %p48 = scmp.eq.s32.totalorder %s17, 1
      %p49 = por %p47, %p48
      %p50 = scmp.ne.s32.totalorder %s39, %s40
      %p51 = scmp.eq.s32.totalorder %s17, 0
      %p52 = por %p50, %p51
      %p53 = scmp.ne.s32.totalorder %s39, %s40
      %p54 = scmp.eq.s32.totalorder %s18, 1
      %p55 = por %p53, %p54
      %p57 = scmp.ne.s32.totalorder %s40, %s56
      %p58 = scmp.eq.s32.totalorder %s18, 0
      %p59 = por %p57, %p58
      %s60 = ssub.s32 %s19, %s31
      %p61 = scmp.eq.s32.totalorder %s60, 0
      %s63 = sadd.s32 %s62, 1
      %s64 = scalar_select %p61, %s62, %s63
      %p67 = pneg %p61
      %p68 = scmp.eq.s32.totalorder %s12, 1
      %p69 = por %p67, %p68
      %p70 = scmp.ne.s32.totalorder %s62, %s65
      %p71 = scmp.eq.s32.totalorder %s12, 0
      %p72 = por %p70, %p71
      %p73 = scmp.ne.s32.totalorder %s62, %s65
      %p74 = scmp.eq.s32.totalorder %s17, 1
      %p75 = por %p73, %p74
      %p76 = scmp.ne.s32.totalorder %s65, %s66
      %p77 = scmp.eq.s32.totalorder %s17, 0
      %p78 = por %p76, %p77
      %p79 = scmp.ne.s32.totalorder %s65, %s66
      %p80 = scmp.eq.s32.totalorder %s18, 1
      %p81 = por %p79, %p80
      %p83 = scmp.ne.s32.totalorder %s66, %s82
      %p84 = scmp.eq.s32.totalorder %s18, 0
      %p85 = por %p83, %p84
      %s87 = sadd.s32 %s86, 1
      %p90 = scmp.eq.s32.totalorder %s12, 1
      %p91 = scmp.ne.s32.totalorder %s86, %s88
      %p92 = scmp.eq.s32.totalorder %s12, 0
      %p93 = por %p91, %p92
      %p94 = scmp.ne.s32.totalorder %s86, %s88
      %p95 = scmp.eq.s32.totalorder %s17, 1
      %p96 = por %p94, %p95
      %p97 = scmp.ne.s32.totalorder %s88, %s89
      %p98 = scmp.eq.s32.totalorder %s17, 0
      %p99 = por %p97, %p98
      %p100 = scmp.ne.s32.totalorder %s88, %s89
      %p101 = scmp.eq.s32.totalorder %s18, 1
      %p102 = por %p100, %p101
      %p104 = scmp.ne.s32.totalorder %s89, %s103
      %p105 = scmp.eq.s32.totalorder %s18, 0
      %p106 = por %p104, %p105
      %s107 = ssub.s32 %s19, %s31
      %s108 = ssub.s32 %s20, %s27
      %s109 = sor.u32 %s107, %s108
      %p110 = scmp.eq.s32.totalorder %s109, 0
      %s112 = sadd.s32 %s111, 1
      %s113 = scalar_select %p110, %s111, %s112
      %p116 = pneg %p110
      %p117 = scmp.eq.s32.totalorder %s12, 1
      %p118 = por %p116, %p117
      %p119 = scmp.ne.s32.totalorder %s111, %s114
      %p120 = scmp.eq.s32.totalorder %s12, 0
      %p121 = por %p119, %p120
      %p122 = scmp.ne.s32.totalorder %s111, %s114
      %p123 = scmp.eq.s32.totalorder %s17, 1
      %p124 = por %p122, %p123
      %p125 = scmp.ne.s32.totalorder %s114, %s115
      %p126 = scmp.eq.s32.totalorder %s17, 0
      %p127 = por %p125, %p126
      %p128 = scmp.ne.s32.totalorder %s114, %s115
      %p129 = scmp.eq.s32.totalorder %s18, 1
      %p130 = por %p128, %p129
      %p132 = scmp.ne.s32.totalorder %s115, %s131
      %p133 = scmp.eq.s32.totalorder %s18, 0
      %p134 = por %p132, %p133
      %p135 = scmp.le.s32.totalorder 1, %s12
      %p136 = scmp.lt.s32.totalorder %s12, 3
      %p137 = pnand %p135, %p136
      %p138 = pneg %p137
      // Predicated region
      $region9: #{tpu_custom_call.1} parent=5 // pred_check
        _
      $region10: #{tpu_custom_call.1} parent=5 // pred_check_branch
        %140 = sbr.rel (%p137) target = $region12
      $region11: #{tpu_custom_call.1} parent=5 // pred_region
        %s141 = ssub.s32 %s12, 1
        // Predicated region
        $region13: #{tpu_custom_call.1} parent=11 // pred_check
          %p142 = pneg %p99
        $region14: #{tpu_custom_call.1} parent=11 // pred_check_branch
          %144 = sbr.rel (%p142) target = $region16
        $region15: #{tpu_custom_call.1} parent=11 // pred_region
          _
        $region16: #{tpu_custom_call.1} parent=11 // pred_fallthru
          _
      $region12: #{tpu_custom_call.1} parent=5 // pred_fallthru
        _
      %p145 = scmp.lt.s32.totalorder %s12, 2
      // Predicated region
      $region17: #{tpu_custom_call.1} parent=5 // pred_check
        %p146 = pneg %p145
      $region18: #{tpu_custom_call.1} parent=5 // pred_check_branch
        %148 = sbr.rel (%p146) target = $region20
      $region19: #{tpu_custom_call.1} parent=5 // pred_region
        // Predicated region
        $region21: #{tpu_custom_call.1} parent=19 // pred_check
          %p149 = pneg %p46
        $region22: #{tpu_custom_call.1} parent=19 // pred_check_branch
          %151 = sbr.rel (%p149) target = $region24
        $region23: #{tpu_custom_call.1} parent=19 // pred_region
          %s152 = smul.u32 2, %s20
          %p153 = scmp.lt.s32.totalorder %s19, 1
          %s154 = scalar_select %p153, %s19, 1
          %p155 = scmp.lt.s32.totalorder %s152, 1
          %s156 = scalar_select %p155, %s152, 1
          %s157 = smul.addr %s154, 6
          %s158 = sadd.s32 %s156, %s157
          %s159 = smul.addr %s158, 8
          %s160 = scalar_lea.vmem %s0, %s159
          %s161 = smul.u32 2, %s20
        $region24: #{tpu_custom_call.1} parent=19 // pred_fallthru
          _
        // Predicated region
        $region25: #{tpu_custom_call.1} parent=19 // pred_check
          %p162 = pneg %p72
        $region26: #{tpu_custom_call.1} parent=19 // pred_check_branch
          %164 = sbr.rel (%p162) target = $region28
        $region27: #{tpu_custom_call.1} parent=19 // pred_region
          %p165 = scmp.lt.s32.totalorder %s19, 1
          %s166 = scalar_select %p165, %s19, 1
          %s167 = smul.addr %s166, 6
          %s168 = smul.addr %s167, 8
          %s169 = scalar_lea.vmem %s1, %s168
        $region28: #{tpu_custom_call.1} parent=19 // pred_fallthru
          _
      $region20: #{tpu_custom_call.1} parent=5 // pred_fallthru
        _
      %p170 = scmp.le.s32.totalorder 1, %s12
      %p171 = scmp.lt.s32.totalorder %s12, 3
      %p172 = pnand %p170, %p171
      %p173 = pneg %p172
      // Predicated region
      $region29: #{tpu_custom_call.1} parent=5 // pred_check
        _
      $region30: #{tpu_custom_call.1} parent=5 // pred_check_branch
        %175 = sbr.rel (%p172) target = $region32
      $region31: #{tpu_custom_call.1} parent=5 // pred_region
        %s176 = ssub.s32 %s12, 1
        %s177 = smul.u32 2, %s22
        %p178 = scmp.lt.s32.totalorder %s21, 1
        %s179 = scalar_select %p178, %s21, 1
        %p180 = scmp.lt.s32.totalorder %s177, 1
        %s181 = scalar_select %p180, %s177, 1
        %s182 = smul.addr %s179, 6
        %s183 = sadd.s32 %s181, %s182
        %s184 = smul.addr %s183, 8
        %s185 = scalar_lea.vmem %s0, %s184
        %p186 = pneg %p52
        %p187 = pneg %p49
        %p188 = scmp.lt.s32.totalorder %s21, 1
        %s189 = scalar_select %p188, %s21, 1
        %s190 = smul.addr %s189, 6
        %s191 = smul.addr %s190, 8
        %s192 = scalar_lea.vmem %s1, %s191
        %p193 = pneg %p78
        %p194 = pneg %p75
        %p195 = pneg %p99
        %p196 = pneg %p96
        %p197 = pneg %p127
        %p198 = pneg %p124
        %s199 = sand.u32 %s114, 1
        %s200 = scalar_lea.sflag [#allocation3], %s199
        %s201 = sand.u32 %s114, 1
        %s202 = smul.addr %s201, 48
        %s203 = scalar_lea.vmem [#allocation2], %s202
        %s204 = smul.u32 2, %s22
        %p205 = scmp.lt.s32.totalorder %s21, 1
        %s206 = scalar_select %p205, %s21, 1
        %p207 = scmp.lt.s32.totalorder %s204, 1
        %s208 = scalar_select %p207, %s204, 1
        %s209 = smul.addr %s206, 6
        %s210 = sadd.s32 %s208, %s209
        %s211 = smul.addr %s210, 8
        %s212 = scalar_lea.vmem %s0, %s211
        %s213 = smul.u32 2, %s22
        %p214 = scmp.lt.s32.totalorder %s21, 1
        %s215 = scalar_select %p214, %s21, 1
        %s216 = smul.addr %s215, 6
        %s217 = smul.addr %s216, 8
        %s218 = scalar_lea.vmem %s1, %s217
        %s219 = smul.u32 2, %s22
        %v220 = vld [vmem:[%s212] sm:$0xff]
        %v221 = vld [vmem:[%s212 + $0x8] sm:$0xff]
        %v222 = vld [vmem:[%s212 + $0x10] sm:$0xff]
        %v223 = vld [vmem:[%s212 + $0x18] sm:$0xff]
        %v224 = vld [vmem:[%s212 + $0x20] sm:$0xff]
        %v225 = vld [vmem:[%s212 + $0x28] sm:$0xff]
        %v226 = vld [vmem:[%s218] sm:$0xff]
        %v227 = vld [vmem:[%s218 + $0x8] sm:$0xff]
        %v228 = vld [vmem:[%s218 + $0x10] sm:$0xff]
        %v229 = vld [vmem:[%s218 + $0x18] sm:$0xff]
        %v230 = vld [vmem:[%s218 + $0x20] sm:$0xff]
        %v231 = vld [vmem:[%s218 + $0x28] sm:$0xff]
        %vm232 = vcmask 130048
        %v234 = vsel %vm232, %v220, 0
        %v237 = vsel %vm232, %v221, 0
        %239 = vmatprep.subr.mxu0 0.0
        %240 = vmatpush1.msra.mxu0 %v226
        %241 = vmatprep.subr.mxu0 0.0
        %242 = vmatpush1.msra.mxu0 %v227
        %243 = vmatprep.subr.mxu0 0.0
        %244 = vmatpush1.msra.mxu0 0.0
        %245 = vmatprep.subr.mxu0 0.0
        %246 = vmatpush1.msra.mxu0 0.0
        %247 = vmatprep.subr.mxu0 0.0
        %248 = vmatpush1.msra.mxu0 0.0
        %249 = vmatprep.subr.mxu0 0.0
        %250 = vmatpush1.msra.mxu0 0.0
        %251 = vmatprep.subr.mxu0 0.0
        %252 = vmatpush1.msra.mxu0 0.0
        %253 = vmatprep.subr.mxu0 0.0
        %254 = vmatpush1.msra.mxu0 0.0
        %255 = vmatprep.subr.mxu0 0.0
        %256 = vmatpush1.msra.mxu0 0.0
        %257 = vmatprep.subr.mxu0 0.0
        %258 = vmatpush1.msra.mxu0 0.0
        %259 = vmatprep.subr.mxu0 0.0
        %260 = vmatpush1.msra.mxu0 0.0
        %261 = vmatprep.subr.mxu0 0.0
        %262 = vmatpush1.msra.mxu0 0.0
        %263 = vmatprep.subr.mxu0 0.0
        %264 = vmatpush1.msra.mxu0 0.0
        %265 = vmatprep.subr.mxu0 0.0
        %266 = vmatpush1.msra.mxu0 0.0
        %267 = vmatprep.subr.mxu0 0.0
        %268 = vmatpush1.msra.mxu0 0.0
        %269 = vmatprep.subr.mxu0 0.0
        %270 = vmatpush1.msra.mxu0 0.0
        %271 = vmatprep.subr.mxu0 0.0
        %272 = vmatpush1.msra.mxu0 0.0
        %273 = vmatprep.subr.mxu0 0.0
        %274 = vmatpush1.msra.mxu0 0.0
        %275 = vmatprep.subr.mxu0 0.0
        %276 = vmatpush1.msra.mxu0 0.0
        %277 = vmatprep.subr.mxu0 0.0
        %278 = vmatpush1.msra.mxu0 0.0
        %279 = vmatprep.subr.mxu0 0.0
        %280 = vmatpush1.msra.mxu0 0.0
        %281 = vmatprep.subr.mxu0 0.0
        %282 = vmatpush1.msra.mxu0 0.0
        %283 = vmatprep.subr.mxu0 0.0
        %284 = vmatpush1.msra.mxu0 0.0
        %285 = vmatprep.subr.mxu0 0.0
        %286 = vmatpush1.msra.mxu0 0.0
        %287 = vmatprep.subr.mxu0 0.0
        %288 = vmatpush1.msra.mxu0 0.0
        %289 = vmatprep.subr.mxu0 0.0
        %290 = vmatpush1.msra.mxu0 0.0
        %291 = vmatprep.subr.mxu0 0.0
        %292 = vmatpush1.msra.mxu0 0.0
        %293 = vmatprep.subr.mxu0 0.0
        %294 = vmatpush1.msra.mxu0 0.0
        %295 = vmatprep.subr.mxu0 0.0
        %296 = vmatpush1.msra.mxu0 0.0
        %297 = vmatprep.subr.mxu0 0.0
        %298 = vmatpush1.msra.mxu0 0.0
        %299 = vmatprep.subr.mxu0 0.0
        %300 = vmatpush1.msra.mxu0 0.0
        %301 = vmatprep.subr.mxu0 0.0
        %302 = vmatpush1.msra.mxu0 0.0
        %303 = vmatprep.mubr.f32.mxu0 0.0
        %304 = vmatmul.mubr.f32.gmra.mrb[0].mxu0 %v234
        %v305 = vpop.f32.mrb[0].mxu0
        %v306 = vadd.f32 0.0, %v305
        %v307 = vpop.f32.mrb[0].mxu0
        %308 = vmatprep.mubr.f32.mxu0 0.0
        %309 = vmatmul.mubr.f32.gmra.mrb[0].mxu0 %v237
        %v310 = vpop.f32.mrb[0].mxu0
        %v311 = vadd.f32 0.0, %v310
        %v312 = vpop.f32.mrb[0].mxu0
        %313 = vdwg.mxu0
        %v315 = vsel %vm232, %v222, 0
        %v318 = vsel %vm232, %v223, 0
        %320 = vmatprep.subr.mxu0 0.0
        %321 = vmatpush1.msra.mxu0 %v228
        %322 = vmatprep.subr.mxu0 0.0
        %323 = vmatpush1.msra.mxu0 %v229
        %324 = vmatprep.subr.mxu0 0.0
        %325 = vmatpush1.msra.mxu0 0.0
        %326 = vmatprep.subr.mxu0 0.0
        %327 = vmatpush1.msra.mxu0 0.0
        %328 = vmatprep.subr.mxu0 0.0
        %329 = vmatpush1.msra.mxu0 0.0
        %330 = vmatprep.subr.mxu0 0.0
        %331 = vmatpush1.msra.mxu0 0.0
        %332 = vmatprep.subr.mxu0 0.0
        %333 = vmatpush1.msra.mxu0 0.0
        %334 = vmatprep.subr.mxu0 0.0
        %335 = vmatpush1.msra.mxu0 0.0
        %336 = vmatprep.subr.mxu0 0.0
        %337 = vmatpush1.msra.mxu0 0.0
        %338 = vmatprep.subr.mxu0 0.0
        %339 = vmatpush1.msra.mxu0 0.0
        %340 = vmatprep.subr.mxu0 0.0
        %341 = vmatpush1.msra.mxu0 0.0
        %342 = vmatprep.subr.mxu0 0.0
        %343 = vmatpush1.msra.mxu0 0.0
        %344 = vmatprep.subr.mxu0 0.0
        %345 = vmatpush1.msra.mxu0 0.0
        %346 = vmatprep.subr.mxu0 0.0
        %347 = vmatpush1.msra.mxu0 0.0
        %348 = vmatprep.subr.mxu0 0.0
        %349 = vmatpush1.msra.mxu0 0.0
        %350 = vmatprep.subr.mxu0 0.0
        %351 = vmatpush1.msra.mxu0 0.0
        %352 = vmatprep.subr.mxu0 0.0
        %353 = vmatpush1.msra.mxu0 0.0
        %354 = vmatprep.subr.mxu0 0.0
        %355 = vmatpush1.msra.mxu0 0.0
        %356 = vmatprep.subr.mxu0 0.0
        %357 = vmatpush1.msra.mxu0 0.0
        %358 = vmatprep.subr.mxu0 0.0
        %359 = vmatpush1.msra.mxu0 0.0
        %360 = vmatprep.subr.mxu0 0.0
        %361 = vmatpush1.msra.mxu0 0.0
        %362 = vmatprep.subr.mxu0 0.0
        %363 = vmatpush1.msra.mxu0 0.0
        %364 = vmatprep.subr.mxu0 0.0
        %365 = vmatpush1.msra.mxu0 0.0
        %366 = vmatprep.subr.mxu0 0.0
        %367 = vmatpush1.msra.mxu0 0.0
        %368 = vmatprep.subr.mxu0 0.0
        %369 = vmatpush1.msra.mxu0 0.0
        %370 = vmatprep.subr.mxu0 0.0
        %371 = vmatpush1.msra.mxu0 0.0
        %372 = vmatprep.subr.mxu0 0.0
        %373 = vmatpush1.msra.mxu0 0.0
        %374 = vmatprep.subr.mxu0 0.0
        %375 = vmatpush1.msra.mxu0 0.0
        %376 = vmatprep.subr.mxu0 0.0
        %377 = vmatpush1.msra.mxu0 0.0
        %378 = vmatprep.subr.mxu0 0.0
        %379 = vmatpush1.msra.mxu0 0.0
        %380 = vmatprep.subr.mxu0 0.0
        %381 = vmatpush1.msra.mxu0 0.0
        %382 = vmatprep.subr.mxu0 0.0
        %383 = vmatpush1.msra.mxu0 0.0
        %384 = vmatprep.mubr.f32.mxu0 0.0
        %385 = vmatmul.mubr.f32.gmra.mrb[0].mxu0 %v315
        %v386 = vpop.f32.mrb[0].mxu0
        %v387 = vadd.f32 0.0, %v386
        %v388 = vpop.f32.mrb[0].mxu0
        %389 = vmatprep.mubr.f32.mxu0 0.0
        %390 = vmatmul.mubr.f32.gmra.mrb[0].mxu0 %v318
        %v391 = vpop.f32.mrb[0].mxu0
        %v392 = vadd.f32 0.0, %v391
        %v393 = vpop.f32.mrb[0].mxu0
        %394 = vdwg.mxu0
        %v396 = vsel %vm232, %v224, 0
        %v399 = vsel %vm232, %v225, 0
        %401 = vmatprep.subr.mxu0 0.0
        %402 = vmatpush1.msra.mxu0 %v230
        %403 = vmatprep.subr.mxu0 0.0
        %404 = vmatpush1.msra.mxu0 %v231
        %405 = vmatprep.subr.mxu0 0.0
        %406 = vmatpush1.msra.mxu0 0.0
        %407 = vmatprep.subr.mxu0 0.0
        %408 = vmatpush1.msra.mxu0 0.0
        %409 = vmatprep.subr.mxu0 0.0
        %410 = vmatpush1.msra.mxu0 0.0
        %411 = vmatprep.subr.mxu0 0.0
        %412 = vmatpush1.msra.mxu0 0.0
        %413 = vmatprep.subr.mxu0 0.0
        %414 = vmatpush1.msra.mxu0 0.0
        %415 = vmatprep.subr.mxu0 0.0
        %416 = vmatpush1.msra.mxu0 0.0
        %417 = vmatprep.subr.mxu0 0.0
        %418 = vmatpush1.msra.mxu0 0.0
        %419 = vmatprep.subr.mxu0 0.0
        %420 = vmatpush1.msra.mxu0 0.0
        %421 = vmatprep.subr.mxu0 0.0
        %422 = vmatpush1.msra.mxu0 0.0
        %423 = vmatprep.subr.mxu0 0.0
        %424 = vmatpush1.msra.mxu0 0.0
        %425 = vmatprep.subr.mxu0 0.0
        %426 = vmatpush1.msra.mxu0 0.0
        %427 = vmatprep.subr.mxu0 0.0
        %428 = vmatpush1.msra.mxu0 0.0
        %429 = vmatprep.subr.mxu0 0.0
        %430 = vmatpush1.msra.mxu0 0.0
        %431 = vmatprep.subr.mxu0 0.0
        %432 = vmatpush1.msra.mxu0 0.0
        %433 = vmatprep.subr.mxu0 0.0
        %434 = vmatpush1.msra.mxu0 0.0
        %435 = vmatprep.subr.mxu0 0.0
        %436 = vmatpush1.msra.mxu0 0.0
        %437 = vmatprep.subr.mxu0 0.0
        %438 = vmatpush1.msra.mxu0 0.0
        %439 = vmatprep.subr.mxu0 0.0
        %440 = vmatpush1.msra.mxu0 0.0
        %441 = vmatprep.subr.mxu0 0.0
        %442 = vmatpush1.msra.mxu0 0.0
        %443 = vmatprep.subr.mxu0 0.0
        %444 = vmatpush1.msra.mxu0 0.0
        %445 = vmatprep.subr.mxu0 0.0
        %446 = vmatpush1.msra.mxu0 0.0
        %447 = vmatprep.subr.mxu0 0.0
        %448 = vmatpush1.msra.mxu0 0.0
        %449 = vmatprep.subr.mxu0 0.0
        %450 = vmatpush1.msra.mxu0 0.0
        %451 = vmatprep.subr.mxu0 0.0
        %452 = vmatpush1.msra.mxu0 0.0
        %453 = vmatprep.subr.mxu0 0.0
        %454 = vmatpush1.msra.mxu0 0.0
        %455 = vmatprep.subr.mxu0 0.0
        %456 = vmatpush1.msra.mxu0 0.0
        %457 = vmatprep.subr.mxu0 0.0
        %458 = vmatpush1.msra.mxu0 0.0
        %459 = vmatprep.subr.mxu0 0.0
        %460 = vmatpush1.msra.mxu0 0.0
        %461 = vmatprep.subr.mxu0 0.0
        %462 = vmatpush1.msra.mxu0 0.0
        %463 = vmatprep.subr.mxu0 0.0
        %464 = vmatpush1.msra.mxu0 0.0
        %465 = vmatprep.mubr.f32.mxu0 0.0
        %466 = vmatmul.mubr.f32.gmra.mrb[0].mxu0 %v396
        %v467 = vpop.f32.mrb[0].mxu0
        %v468 = vadd.f32 0.0, %v467
        %v469 = vpop.f32.mrb[0].mxu0
        %470 = vmatprep.mubr.f32.mxu0 0.0
        %471 = vmatmul.mubr.f32.gmra.mrb[0].mxu0 %v399
        %v472 = vpop.f32.mrb[0].mxu0
        %v473 = vadd.f32 0.0, %v472
        %v474 = vpop.f32.mrb[0].mxu0
        %475 = vdwg.mxu0
        %v476 = vld [vmem:[%s2] sm:$0xff]
        %v477 = vld [vmem:[%s2 + $0x8] sm:$0xff]
        %v478 = vld [vmem:[%s2 + $0x10] sm:$0xff]
        %vm479 = vcmask 64512
        %v481 = vsel %vm479, %v306, 0
        %v484 = vsel %vm479, %v311, 0
        %486 = vmatprep.subr.mxu0 0.0
        %487 = vmatpush1.msra.mxu0 %v476
        %488 = vmatprep.subr.mxu0 0.0
        %489 = vmatpush1.msra.mxu0 0.0
        %490 = vmatprep.subr.mxu0 0.0
        %491 = vmatpush1.msra.mxu0 0.0
        %492 = vmatprep.subr.mxu0 0.0
        %493 = vmatpush1.msra.mxu0 0.0
        %494 = vmatprep.subr.mxu0 0.0
        %495 = vmatpush1.msra.mxu0 0.0
        %496 = vmatprep.subr.mxu0 0.0
        %497 = vmatpush1.msra.mxu0 0.0
        %498 = vmatprep.subr.mxu0 0.0
        %499 = vmatpush1.msra.mxu0 0.0
        %500 = vmatprep.subr.mxu0 0.0
        %501 = vmatpush1.msra.mxu0 0.0
        %502 = vmatprep.subr.mxu0 0.0
        %503 = vmatpush1.msra.mxu0 0.0
        %504 = vmatprep.subr.mxu0 0.0
        %505 = vmatpush1.msra.mxu0 0.0
        %506 = vmatprep.subr.mxu0 0.0
        %507 = vmatpush1.msra.mxu0 0.0
        %508 = vmatprep.subr.mxu0 0.0
        %509 = vmatpush1.msra.mxu0 0.0
        %510 = vmatprep.subr.mxu0 0.0
        %511 = vmatpush1.msra.mxu0 0.0
        %512 = vmatprep.subr.mxu0 0.0
        %513 = vmatpush1.msra.mxu0 0.0
        %514 = vmatprep.subr.mxu0 0.0
        %515 = vmatpush1.msra.mxu0 0.0
        %516 = vmatprep.subr.mxu0 0.0
        %517 = vmatpush1.msra.mxu0 0.0
        %518 = vmatprep.subr.mxu0 0.0
        %519 = vmatpush1.msra.mxu0 0.0
        %520 = vmatprep.subr.mxu0 0.0
        %521 = vmatpush1.msra.mxu0 0.0
        %522 = vmatprep.subr.mxu0 0.0
        %523 = vmatpush1.msra.mxu0 0.0
        %524 = vmatprep.subr.mxu0 0.0
        %525 = vmatpush1.msra.mxu0 0.0
        %526 = vmatprep.subr.mxu0 0.0
        %527 = vmatpush1.msra.mxu0 0.0
        %528 = vmatprep.subr.mxu0 0.0
        %529 = vmatpush1.msra.mxu0 0.0
        %530 = vmatprep.subr.mxu0 0.0
        %531 = vmatpush1.msra.mxu0 0.0
        %532 = vmatprep.subr.mxu0 0.0
        %533 = vmatpush1.msra.mxu0 0.0
        %534 = vmatprep.subr.mxu0 0.0
        %535 = vmatpush1.msra.mxu0 0.0
        %536 = vmatprep.subr.mxu0 0.0
        %537 = vmatpush1.msra.mxu0 0.0
        %538 = vmatprep.subr.mxu0 0.0
        %539 = vmatpush1.msra.mxu0 0.0
        %540 = vmatprep.subr.mxu0 0.0
        %541 = vmatpush1.msra.mxu0 0.0
        %542 = vmatprep.subr.mxu0 0.0
        %543 = vmatpush1.msra.mxu0 0.0
        %544 = vmatprep.subr.mxu0 0.0
        %545 = vmatpush1.msra.mxu0 0.0
        %546 = vmatprep.subr.mxu0 0.0
        %547 = vmatpush1.msra.mxu0 0.0
        %548 = vmatprep.subr.mxu0 0.0
        %549 = vmatpush1.msra.mxu0 0.0
        %550 = vmatprep.mubr.f32.mxu0 0.0
        %551 = vmatmul.mubr.f32.gmra.mrb[0].mxu0 %v481
        %v552 = vpop.f32.mrb[0].mxu0
        %v553 = vadd.f32 0.0, %v552
        %v554 = vpop.f32.mrb[0].mxu0
        %555 = vmatprep.mubr.f32.mxu0 0.0
        %556 = vmatmul.mubr.f32.gmra.mrb[0].mxu0 %v484
        %v557 = vpop.f32.mrb[0].mxu0
        %v558 = vadd.f32 0.0, %v557
        %v559 = vpop.f32.mrb[0].mxu0
        %560 = vdwg.mxu0
        %v562 = vsel %vm479, %v387, 0
        %v565 = vsel %vm479, %v392, 0
        %567 = vmatprep.subr.mxu0 0.0
        %568 = vmatpush1.msra.mxu0 %v477
        %569 = vmatprep.subr.mxu0 0.0
        %570 = vmatpush1.msra.mxu0 0.0
        %571 = vmatprep.subr.mxu0 0.0
        %572 = vmatpush1.msra.mxu0 0.0
        %573 = vmatprep.subr.mxu0 0.0
        %574 = vmatpush1.msra.mxu0 0.0
        %575 = vmatprep.subr.mxu0 0.0
        %576 = vmatpush1.msra.mxu0 0.0
        %577 = vmatprep.subr.mxu0 0.0
        %578 = vmatpush1.msra.mxu0 0.0
        %579 = vmatprep.subr.mxu0 0.0
        %580 = vmatpush1.msra.mxu0 0.0
        %581 = vmatprep.subr.mxu0 0.0
        %582 = vmatpush1.msra.mxu0 0.0
        %583 = vmatprep.subr.mxu0 0.0
        %584 = vmatpush1.msra.mxu0 0.0
        %585 = vmatprep.subr.mxu0 0.0
        %586 = vmatpush1.msra.mxu0 0.0
        %587 = vmatprep.subr.mxu0 0.0
        %588 = vmatpush1.msra.mxu0 0.0
        %589 = vmatprep.subr.mxu0 0.0
        %590 = vmatpush1.msra.mxu0 0.0
        %591 = vmatprep.subr.mxu0 0.0
        %592 = vmatpush1.msra.mxu0 0.0
        %593 = vmatprep.subr.mxu0 0.0
        %594 = vmatpush1.msra.mxu0 0.0
        %595 = vmatprep.subr.mxu0 0.0
        %596 = vmatpush1.msra.mxu0 0.0
        %597 = vmatprep.subr.mxu0 0.0
        %598 = vmatpush1.msra.mxu0 0.0
        %599 = vmatprep.subr.mxu0 0.0
        %600 = vmatpush1.msra.mxu0 0.0
        %601 = vmatprep.subr.mxu0 0.0
        %602 = vmatpush1.msra.mxu0 0.0
        %603 = vmatprep.subr.mxu0 0.0
        %604 = vmatpush1.msra.mxu0 0.0
        %605 = vmatprep.subr.mxu0 0.0
        %606 = vmatpush1.msra.mxu0 0.0
        %607 = vmatprep.subr.mxu0 0.0
        %608 = vmatpush1.msra.mxu0 0.0
        %609 = vmatprep.subr.mxu0 0.0
        %610 = vmatpush1.msra.mxu0 0.0
        %611 = vmatprep.subr.mxu0 0.0
        %612 = vmatpush1.msra.mxu0 0.0
        %613 = vmatprep.subr.mxu0 0.0
        %614 = vmatpush1.msra.mxu0 0.0
        %615 = vmatprep.subr.mxu0 0.0
        %616 = vmatpush1.msra.mxu0 0.0
        %617 = vmatprep.subr.mxu0 0.0
        %618 = vmatpush1.msra.mxu0 0.0
        %619 = vmatprep.subr.mxu0 0.0
        %620 = vmatpush1.msra.mxu0 0.0
        %621 = vmatprep.subr.mxu0 0.0
        %622 = vmatpush1.msra.mxu0 0.0
        %623 = vmatprep.subr.mxu0 0.0
        %624 = vmatpush1.msra.mxu0 0.0
        %625 = vmatprep.subr.mxu0 0.0
        %626 = vmatpush1.msra.mxu0 0.0
        %627 = vmatprep.subr.mxu0 0.0
        %628 = vmatpush1.msra.mxu0 0.0
        %629 = vmatprep.subr.mxu0 0.0
        %630 = vmatpush1.msra.mxu0 0.0
        %631 = vmatprep.mubr.f32.mxu0 0.0
        %632 = vmatmul.mubr.f32.gmra.mrb[0].mxu0 %v562
        %v633 = vpop.f32.mrb[0].mxu0
        %v634 = vadd.f32 0.0, %v633
        %v635 = vpop.f32.mrb[0].mxu0
        %636 = vmatprep.mubr.f32.mxu0 0.0
        %637 = vmatmul.mubr.f32.gmra.mrb[0].mxu0 %v565
        %v638 = vpop.f32.mrb[0].mxu0
        %v639 = vadd.f32 0.0, %v638
        %v640 = vpop.f32.mrb[0].mxu0
        %641 = vdwg.mxu0
        %v643 = vsel %vm479, %v468, 0
        %v646 = vsel %vm479, %v473, 0
        %648 = vmatprep.subr.mxu0 0.0
        %649 = vmatpush1.msra.mxu0 %v478
        %650 = vmatprep.subr.mxu0 0.0
        %651 = vmatpush1.msra.mxu0 0.0
        %652 = vmatprep.subr.mxu0 0.0
        %653 = vmatpush1.msra.mxu0 0.0
        %654 = vmatprep.subr.mxu0 0.0
        %655 = vmatpush1.msra.mxu0 0.0
        %656 = vmatprep.subr.mxu0 0.0
        %657 = vmatpush1.msra.mxu0 0.0
        %658 = vmatprep.subr.mxu0 0.0
        %659 = vmatpush1.msra.mxu0 0.0
        %660 = vmatprep.subr.mxu0 0.0
        %661 = vmatpush1.msra.mxu0 0.0
        %662 = vmatprep.subr.mxu0 0.0
        %663 = vmatpush1.msra.mxu0 0.0
        %664 = vmatprep.subr.mxu0 0.0
        %665 = vmatpush1.msra.mxu0 0.0
        %666 = vmatprep.subr.mxu0 0.0
        %667 = vmatpush1.msra.mxu0 0.0
        %668 = vmatprep.subr.mxu0 0.0
        %669 = vmatpush1.msra.mxu0 0.0
        %670 = vmatprep.subr.mxu0 0.0
        %671 = vmatpush1.msra.mxu0 0.0
        %672 = vmatprep.subr.mxu0 0.0
        %673 = vmatpush1.msra.mxu0 0.0
        %674 = vmatprep.subr.mxu0 0.0
        %675 = vmatpush1.msra.mxu0 0.0
        %676 = vmatprep.subr.mxu0 0.0
        %677 = vmatpush1.msra.mxu0 0.0
        %678 = vmatprep.subr.mxu0 0.0
        %679 = vmatpush1.msra.mxu0 0.0
        %680 = vmatprep.subr.mxu0 0.0
        %681 = vmatpush1.msra.mxu0 0.0
        %682 = vmatprep.subr.mxu0 0.0
        %683 = vmatpush1.msra.mxu0 0.0
        %684 = vmatprep.subr.mxu0 0.0
        %685 = vmatpush1.msra.mxu0 0.0
        %686 = vmatprep.subr.mxu0 0.0
        %687 = vmatpush1.msra.mxu0 0.0
        %688 = vmatprep.subr.mxu0 0.0
        %689 = vmatpush1.msra.mxu0 0.0
        %690 = vmatprep.subr.mxu0 0.0
        %691 = vmatpush1.msra.mxu0 0.0
        %692 = vmatprep.subr.mxu0 0.0
        %693 = vmatpush1.msra.mxu0 0.0
        %694 = vmatprep.subr.mxu0 0.0
        %695 = vmatpush1.msra.mxu0 0.0
        %696 = vmatprep.subr.mxu0 0.0
        %697 = vmatpush1.msra.mxu0 0.0
        %698 = vmatprep.subr.mxu0 0.0
        %699 = vmatpush1.msra.mxu0 0.0
        %700 = vmatprep.subr.mxu0 0.0
        %701 = vmatpush1.msra.mxu0 0.0
        %702 = vmatprep.subr.mxu0 0.0
        %703 = vmatpush1.msra.mxu0 0.0
        %704 = vmatprep.subr.mxu0 0.0
        %705 = vmatpush1.msra.mxu0 0.0
        %706 = vmatprep.subr.mxu0 0.0
        %707 = vmatpush1.msra.mxu0 0.0
        %708 = vmatprep.subr.mxu0 0.0
        %709 = vmatpush1.msra.mxu0 0.0
        %710 = vmatprep.subr.mxu0 0.0
        %711 = vmatpush1.msra.mxu0 0.0
        %712 = vmatprep.mubr.f32.mxu0 0.0
        %713 = vmatmul.mubr.f32.gmra.mrb[0].mxu0 %v643
        %v714 = vpop.f32.mrb[0].mxu0
        %v715 = vadd.f32 0.0, %v714
        %v716 = vpop.f32.mrb[0].mxu0
        %717 = vmatprep.mubr.f32.mxu0 0.0
        %718 = vmatmul.mubr.f32.gmra.mrb[0].mxu0 %v646
        %v719 = vpop.f32.mrb[0].mxu0
        %v720 = vadd.f32 0.0, %v719
        %v721 = vpop.f32.mrb[0].mxu0
        %722 = vdwg.mxu0
        %vm723 = vcmask 261120
        %724 = vst.msk [vmem:[%s203] sm:$0xff] %vm723, %v553
        %725 = vst.msk [vmem:[%s203 + $0x8] sm:$0xff] %vm723, %v558
        %726 = vst.msk [vmem:[%s203 + $0x10] sm:$0xff] %vm723, %v634
        %727 = vst.msk [vmem:[%s203 + $0x18] sm:$0xff] %vm723, %v639
        %728 = vst.msk [vmem:[%s203 + $0x20] sm:$0xff] %vm723, %v715
        %729 = vst.msk [vmem:[%s203 + $0x28] sm:$0xff] %vm723, %v720
        %s730 = sand.u32 %s114, 1
        %s731 = scalar_lea.sflag [#allocation3], %s730
        %s732 = sand.u32 %s114, 1
        %s733 = smul.addr %s732, 48
        %s734 = scalar_lea.vmem [#allocation2], %s733
        // Predicated region
        $region33: #{tpu_custom_call.1} parent=31 // pred_check
          %p735 = pneg %p124
        $region34: #{tpu_custom_call.1} parent=31 // pred_check_branch
          %737 = sbr.rel (%p735) target = $region36
        $region35: #{tpu_custom_call.1} parent=31 // pred_region
          %s738 = smul.u32 2, %s22
          %s740 = ssub.s32 768, 768
          %741 = vsyncadd %s731, %s740
          %s742 = smul.addr %s21, 6
          %s743 = sadd.s32 %s738, %s742
          %s744 = smul.addr %s743, 128
          %s745 = scalar_lea.hbm %s3, %s744
          %s746 = sshll.u32 %s734, 4
          %s747 = int_to_ptr.vmem [resolvable:$true] %s746
          %752 = dma.vmem_to_hbm [thread:$0]  %s747, 768, %s745, %s731, 128, 128, 8
        $region36: #{tpu_custom_call.1} parent=31 // pred_fallthru
          _
      $region32: #{tpu_custom_call.1} parent=5 // pred_fallthru
        _
      %p753 = scmp.le.s32.totalorder 2, %s12
      // Predicated region
      $region37: #{tpu_custom_call.1} parent=5 // pred_check
        %p754 = pneg %p753
      $region38: #{tpu_custom_call.1} parent=5 // pred_check_branch
        %756 = sbr.rel (%p754) target = $region40
      $region39: #{tpu_custom_call.1} parent=5 // pred_region
        %s757 = ssub.s32 %s12, 2
        // Predicated region
        $region41: #{tpu_custom_call.1} parent=39 // pred_check
          %p758 = pneg %p130
        $region42: #{tpu_custom_call.1} parent=39 // pred_check_branch
          %760 = sbr.rel (%p758) target = $region44
        $region43: #{tpu_custom_call.1} parent=39 // pred_region
          %s761 = sand.u32 %s115, 1
          %s762 = scalar_lea.sflag [#allocation3], %s761
          %s763 = sand.u32 %s115, 1
          %s764 = smul.addr %s763, 48
          %s765 = scalar_lea.vmem [#allocation2], %s764
          %766 = dma.done %s762, 768
        $region44: #{tpu_custom_call.1} parent=39 // pred_fallthru
          _
      $region40: #{tpu_custom_call.1} parent=5 // pred_fallthru
        _
    $region6: #{tpu_custom_call.1} parent=1 // loop_footer
      %s16 = sadd.s32 1, %s12
    $region7: #{tpu_custom_call.1} parent=1 // loop_footer_branch
      %11 = sbr.rel target = $region3
    $region8: #{tpu_custom_call.1} parent=1 // loop_exit
      _
    %767 = vsyncpa [#allocation3], 1
    %s768 = scalar_lea.sflag [#allocation3], 1
    %769 = vsyncpa %s768, 1

</llo_original>
